<compile_context>
chip_gen: v7x
topology: tpu7x:2x2x1
jax: 0.10.0
libtpu: 0.0.40
codegen_flags: <defaults>
</compile_context>

<pallas_src>
import functools

import jax
import jax.numpy as jnp
from jax import lax
from jax.experimental import pallas as pl
from jax.experimental.pallas import tpu as pltpu


def _round_up(x, m):
    return ((x + m - 1) // m) * m


def _cdiv(a, b):
    return (a + b - 1) // b


def _device_vmem_budget():
    """(vmem_limit_bytes, working-set budget) sized per TPU generation."""
    try:
        phys = int(pltpu.get_tpu_info().vmem_capacity_bytes)
    except Exception:
        phys = 64 << 20                      # conservative (v7x-sized) fallback
    if phys <= (64 << 20):                   # v7x: 64 MiB physical VMEM
        limit = 32 << 20
    else:                                    # v5e / v6e: 128 MiB physical VMEM
        limit = 96 << 20
    budget = limit - (8 << 20)               # headroom for compiler scratch
    return limit, budget


# ----------------------------------------------------------------------------
# Fast path: whole U resident in VMEM, fused down + noise + up in one kernel.
# ----------------------------------------------------------------------------
def _fused_kernel(*refs, sigma, add_noise):
    if add_noise:
        x_ref, u_ref, noise_ref, y_ref = refs
    else:
        x_ref, u_ref, y_ref = refs
        noise_ref = None

    u = u_ref[...]
    # z = x @ U.T   (contract on D; U consumed in its native (P, D) layout)
    z = lax.dot_general(
        x_ref[...], u,
        dimension_numbers=(((1,), (1,)), ((), ())),
        preferred_element_type=jnp.float32)
    if add_noise:
        z = z + noise_ref[...].astype(jnp.float32) * jnp.float32(sigma)
    # y = z @ U
    y = lax.dot_general(
        z.astype(u.dtype), u,
        dimension_numbers=(((1,), (0,)), ((), ())),
        preferred_element_type=jnp.float32)
    y_ref[...] = y.astype(y_ref.dtype)


# ----------------------------------------------------------------------------
# Streaming path, phase 1: z_parts[s] = sum_k x_tile @ U_tile.T  (+ noise once)
# ----------------------------------------------------------------------------
def _down_kernel(*refs, sigma, add_noise, nk_per, tk, d_valid, mask_tail):
    if add_noise:
        x_ref, u_ref, noise_ref, z_ref = refs
    else:
        x_ref, u_ref, z_ref = refs
        noise_ref = None

    s = pl.program_id(0)
    k = pl.program_id(1)

    @pl.when(k == 0)
    def _():
        z_ref[...] = jnp.zeros_like(z_ref)

    u = u_ref[...]
    if mask_tail:
        # U is NOT padded in HBM; boundary tiles carry undefined data past D.
        start = (s * nk_per + k) * tk
        col = start + lax.broadcasted_iota(jnp.int32, u.shape, 1)
        u = jnp.where(col < d_valid, u, jnp.zeros_like(u))

    z_ref[...] += lax.dot_general(
        x_ref[...], u,
        dimension_numbers=(((1,), (1,)), ((), ())),
        preferred_element_type=jnp.float32)

    if add_noise:
        @pl.when(jnp.logical_and(s == 0, k == pl.num_programs(1) - 1))
        def _():
            z_ref[...] += noise_ref[...].astype(jnp.float32) * jnp.float32(sigma)


# ----------------------------------------------------------------------------
# Streaming path, phase 2: y_tile = (sum_s z_parts[s]) @ U_tile
# ----------------------------------------------------------------------------
def _up_kernel(z_ref, u_ref, y_ref, *, tk, d_valid, mask_tail):
    k = pl.program_id(0)
    u = u_ref[...]
    if mask_tail:
        col = k * tk + lax.broadcasted_iota(jnp.int32, u.shape, 1)
        u = jnp.where(col < d_valid, u, jnp.zeros_like(u))
    z = jnp.sum(z_ref[...], axis=0).astype(u.dtype)
    y = lax.dot_general(
        z, u,
        dimension_numbers=(((1,), (0,)), ((), ())),
        preferred_element_type=jnp.float32)
    y_ref[...] = y.astype(y_ref.dtype)


def projector_forward(x, project_U, sigma, noise_key=None, *, training=True,
                      tile_k=None, force_tiled=False):
    """Pallas equivalent of Projector.forward / project_with_noise."""
    shape_init = x.shape
    B = shape_init[0]
    D = 1
    for s in shape_init[1:]:
        D *= s
    P, D_u = project_U.shape
    assert D_u == D, (project_U.shape, D)

    out_dtype = x.dtype
    cdtype = jnp.promote_types(x.dtype, project_U.dtype)
    x2d = x.reshape(B, D).astype(cdtype)
    u2d = project_U.astype(cdtype)
    itemsize = jnp.dtype(cdtype).itemsize
    out_item = jnp.dtype(out_dtype).itemsize

    vmem_limit, budget = _device_vmem_budget()

    add_noise = bool(training) and (noise_key is not None)
    noise = None
    if add_noise:
        # Host-side RNG kept so results are reproducible against the reference.
        noise = jax.random.normal(noise_key, (B, P), dtype=jnp.float32)

    # ------------------------------------------------------------------ fast
    fast_bytes = (P * D * itemsize                       # whole U
                  + B * D * (itemsize + out_item + 4)    # x, y, f32 intermediate
                  + B * P * 12)                          # z + noise
    if (not force_tiled) and fast_bytes <= budget:
        inputs = [x2d, u2d]
        if add_noise:
            inputs.append(noise)
        y = pl.pallas_call(
            functools.partial(_fused_kernel, sigma=float(sigma),
                              add_noise=add_noise),
            out_shape=jax.ShapeDtypeStruct((B, D), out_dtype),
            compiler_params=pltpu.CompilerParams(vmem_limit_bytes=vmem_limit),
            cost_estimate=pl.CostEstimate(
                flops=4 * B * P * D, transcendentals=0,
                bytes_accessed=P * D * itemsize + B * D * (itemsize + out_item)),
        )(*inputs)
        return y.reshape(shape_init)

    # ----------------------------------------------------------------- tiled
    sub_min = max(8, 32 // itemsize)          # packed-sublane minimum per dtype
    Bp = max(sub_min, _round_up(B, sub_min))
    Dk = _round_up(D, 128)

    if tile_k is not None:
        tk = max(128, (int(tile_k) // 128) * 128)
    else:
        # Biggest double-buffered (P, tk) + (Bp, tk) working set that fits.
        per_lane = 2 * P * itemsize + 2 * Bp * (itemsize + out_item)
        tk = (budget // max(per_lane, 1)) // 128 * 128
        tk = max(128, min(tk, 32768))
    # Keep >= 2 tiles so the phase-2 "parallel" grid can shard across cores.
    tk = min(tk, max(128, _round_up(_cdiv(Dk, 2), 128)))
    nk0 = _cdiv(Dk, tk)
    # 2-way split of the D reduction over a leading parallel axis (both
    # TensorCores on v7x; a harmless serial loop on v5e/v6e).
    if nk0 >= 2 and nk0 % 2 == 0:
        nsplit, nk_per = 2, nk0 // 2
    else:
        nsplit, nk_per = 1, nk0
    Dp = nk0 * tk
    mask_tail = (D % tk) != 0

    # x/y are tiny next to U: zero-pad x (so padded columns are true zeros).
    # project_U is NOT padded/copied: boundary U tiles are masked in-kernel.
    xp = jnp.pad(x2d, ((0, Bp - B), (0, Dp - D))) if (Bp != B or Dp != D) else x2d

    inputs = [xp, u2d]
    in_specs = [
        pl.BlockSpec((Bp, tk), lambda s, k: (0, s * nk_per + k)),   # x tile
        pl.BlockSpec((P, tk), lambda s, k: (0, s * nk_per + k)),    # U tile
    ]
    if add_noise:
        noise_p = jnp.pad(noise, ((0, Bp - B), (0, 0))) if Bp != B else noise
        inputs.append(noise_p)
        in_specs.append(pl.BlockSpec((Bp, P), lambda s, k: (0, 0)))

    down_bytes = (Bp * Dp * itemsize + P * D * itemsize
                  + nsplit * Bp * P * 4 + (Bp * P * 4 if add_noise else 0))
    z_parts = pl.pallas_call(
        functools.partial(_down_kernel, sigma=float(sigma), add_noise=add_noise,
                          nk_per=nk_per, tk=tk, d_valid=D, mask_tail=mask_tail),
        out_shape=jax.ShapeDtypeStruct((nsplit, Bp, P), jnp.float32),
        grid=(nsplit, nk_per),
        in_specs=in_specs,
        out_specs=pl.BlockSpec((None, Bp, P), lambda s, k: (s, 0, 0)),
        compiler_params=pltpu.CompilerParams(
            dimension_semantics=("parallel", "arbitrary"),
            vmem_limit_bytes=vmem_limit),
        cost_estimate=pl.CostEstimate(
            flops=2 * Bp * P * Dp, transcendentals=0, bytes_accessed=down_bytes),
    )(*inputs)

    up_bytes = nsplit * Bp * P * 4 + P * D * itemsize + Bp * Dp * out_item
    y_pad = pl.pallas_call(
        functools.partial(_up_kernel, tk=tk, d_valid=D, mask_tail=mask_tail),
        out_shape=jax.ShapeDtypeStruct((Bp, Dp), out_dtype),
        grid=(nk0,),
        in_specs=[
            pl.BlockSpec((nsplit, Bp, P), lambda k: (0, 0, 0)),
            pl.BlockSpec((P, tk), lambda k: (0, k)),
        ],
        out_specs=pl.BlockSpec((Bp, tk), lambda k: (0, k)),
        compiler_params=pltpu.CompilerParams(
            dimension_semantics=("parallel",),
            vmem_limit_bytes=vmem_limit),
        cost_estimate=pl.CostEstimate(
            flops=2 * Bp * P * Dp, transcendentals=0, bytes_accessed=up_bytes),
    )(z_parts, u2d)

    return y_pad[:B, :D].reshape(shape_init)


def projector_forward_ref(x, project_U, sigma, noise, *, training=True):
    """Pure-JAX reference (same math, same noise) for verification."""
    B = x.shape[0]
    shape_init = x.shape
    x2d = x.reshape(B, -1)
    z = x2d @ project_U.T
    if training:
        z = z + noise * sigma
    y = z @ project_U
    return y.reshape(shape_init)


if __name__ == "__main__":
    key = jax.random.PRNGKey(0)
    k_x, k_u, k_noise, k_x2, k_u2 = jax.random.split(key, 5)

    # Shapes consistent with the module: x = (batch, C, H, W).
    B, C, H, W = 2, 4, 16, 16
    D = C * H * W            # 1024
    project_n = 32
    sigma = 0.25

    x = jax.random.normal(k_x, (B, C, H, W), dtype=jnp.float32)
    # Deterministic synthetic "PCA components" (rows of the projection matrix).
    project_U = jax.random.normal(k_u, (project_n, D), dtype=jnp.float32) / jnp.sqrt(D)
    noise = jax.random.normal(k_noise, (B, project_n), dtype=jnp.float32)

    ref_train = projector_forward_ref(x, project_U, sigma, noise, training=True)
    ref_eval = projector_forward_ref(x, project_U, sigma, noise, training=False)

    # 1) Fast path (whole U resident in VMEM, single fused pass), training mode.
    out = jax.block_until_ready(
        projector_forward(x, project_U, sigma, k_noise, training=True))
    assert out.shape == x.shape
    assert jnp.allclose(out, ref_train, atol=1e-3, rtol=1e-3), "fused train mismatch"

    # 2) Eval mode on the fast path (noise path compiled out).
    out_eval = jax.block_until_ready(
        projector_forward(x, project_U, sigma, None, training=False))
    assert jnp.allclose(out_eval, ref_eval, atol=1e-3, rtol=1e-3), "fused eval mismatch"

    # 3) Forced streaming path: 4 D tiles, 2-way parallel reduction split +
    #    resident accumulators + parallel up-projection grid.
    out_t = jax.block_until_ready(
        projector_forward(x, project_U, sigma, k_noise, training=True,
                          tile_k=256, force_tiled=True))
    assert jnp.allclose(out_t, ref_train, atol=1e-3, rtol=1e-3), "tiled train mismatch"

    # 4) Non-128-multiple feature dim (D = 300): exercises the unpadded-U path
    #    with in-kernel boundary masking, on both fused and streaming paths.
    B2, C2, H2, W2 = 2, 3, 10, 10
    D2 = C2 * H2 * W2        # 300
    P2 = 16
    x2 = jax.random.normal(k_x2, (B2, C2, H2, W2), dtype=jnp.float32)
    U2 = jax.random.normal(k_u2, (P2, D2), dtype=jnp.float32) / jnp.sqrt(D2)
    noise2 = jax.random.normal(k_noise, (B2, P2), dtype=jnp.float32)
    ref2 = projector_forward_ref(x2, U2, sigma, noise2, training=True)

    out2_fast = jax.block_until_ready(
        projector_forward(x2, U2, sigma, k_noise, training=True))
    assert jnp.allclose(out2_fast, ref2, atol=1e-3, rtol=1e-3), "fused ragged mismatch"

    out2_tiled = jax.block_until_ready(
        projector_forward(x2, U2, sigma, k_noise, training=True,
                          tile_k=256, force_tiled=True))
    assert jnp.allclose(out2_tiled, ref2, atol=1e-3, rtol=1e-3), "tiled ragged mismatch"

    print("KERNEL_OK")
</pallas_src>

<mosaic_0001>
module attributes {stable_mosaic.version = 11 : i64} {
  func.func @_fused_kernel(%arg0: memref<2x1024xf32, #tpu.memory_space<vmem>>, %arg1: memref<32x1024xf32, #tpu.memory_space<vmem>>, %arg2: memref<2x32xf32, #tpu.memory_space<vmem>>, %arg3: memref<2x1024xf32, #tpu.memory_space<vmem>>) attributes {dimension_semantics = [], scalar_prefetch = 0 : i64, scratch_operands = 0 : i64, tpu.core_type = #tpu.core_type<tc>} {
    %c0 = arith.constant 0 : index
    %c0_0 = arith.constant 0 : index
    %0 = vector.load %arg1[%c0, %c0_0] : memref<32x1024xf32, #tpu.memory_space<vmem>>, vector<32x1024xf32>
    %c0_1 = arith.constant 0 : index
    %c0_2 = arith.constant 0 : index
    %1 = vector.load %arg0[%c0_1, %c0_2] : memref<2x1024xf32, #tpu.memory_space<vmem>>, vector<2x1024xf32>
    %cst = arith.constant dense<0.000000e+00> : vector<2x32xf32>
    %2 = tpu.matmul %1, %0, %cst {dimension_numbers = #tpu.dot_dimension_numbers<[1], [1], [0], [0], [0, 0, 1, 0], [], []>} : vector<2x1024xf32>, vector<32x1024xf32>, vector<2x32xf32> -> vector<2x32xf32>
    %c0_3 = arith.constant 0 : index
    %c0_4 = arith.constant 0 : index
    %3 = vector.load %arg2[%c0_3, %c0_4] : memref<2x32xf32, #tpu.memory_space<vmem>>, vector<2x32xf32>
    %cst_5 = arith.constant 2.500000e-01 : f32
    %4 = vector.broadcast %cst_5 : f32 to vector<2x32xf32>
    %5 = arith.mulf %3, %4 : vector<2x32xf32>
    %6 = arith.addf %2, %5 : vector<2x32xf32>
    %cst_6 = arith.constant dense<0.000000e+00> : vector<2x1024xf32>
    %7 = tpu.matmul %6, %0, %cst_6 {dimension_numbers = #tpu.dot_dimension_numbers<[1], [0], [0], [1], [0, 0, 1, 1], [], []>} : vector<2x32xf32>, vector<32x1024xf32>, vector<2x1024xf32> -> vector<2x1024xf32>
    %c0_7 = arith.constant 0 : index
    %c0_8 = arith.constant 0 : index
    %8 = vector.load %arg3[%c0_7, %c0_8] : memref<2x1024xf32, #tpu.memory_space<vmem>>, vector<2x1024xf32>
    tpu.vector_store %arg3[%c0_7, %c0_8], %7 {strides = array<i32>} : memref<2x1024xf32, #tpu.memory_space<vmem>>, vector<2x1024xf32>,
    return
  }
}

</mosaic_0001>

<llo_original>
// kernel: tpu_custom_call.1
$region0: #{tpu_custom_call.1}
  #allocation0 [shape = 'u32[]', space=smem, size = 0x4, offset = 0x4, fixed_abs, tag = 'smem constant byte address 0x4 - core index']
  #allocation1 [shape = 'u32[144,128]{1,0:T(1,128)}', space=vmem, size = 0x12000, scoped, tag = 'internal scratch']
  %s0 = inlined_call_operand.hbm [shape: f32[2,1024], index: 0, kind: input, shape index: {}]
  %s1 = inlined_call_operand.hbm [shape: f32[32,1024], index: 1, kind: input, shape index: {}]
  %s2 = inlined_call_operand.vmem [shape: f32[2,32], index: 2, kind: input, shape index: {}]
  %s3 = inlined_call_operand.hbm [shape: f32[2,1024], index: 3, kind: output, shape index: {}]
  %s4 = sld [smem:[#allocation0]]
  $region30: #{tpu_custom_call.1} parent=0
    _
  %s6 = ssub.s32 1, %s4
  %s7 = scalar_select 0, %s6, %s4
  $region1: #{tpu_custom_call.1} parent=0
    #allocation2 [shape = 'u8[8192]{0}', space=vmem, size = 0x2000, scoped, tag = 'input window, operand 0, single buffered']
    #allocation3 [shape = 's32[1]{0}', space=sflag, size = 0x4, scoped, tag = 'scoped memory for tpu_custom_call.1']
    #allocation4 [shape = 's32[1]{0}', space=sflag, size = 0x4, scoped, tag = 'scoped memory for tpu_custom_call.1']
    #allocation5 [shape = 'u8[131072]{0}', space=vmem, size = 0x20000, scoped, tag = 'input window, operand 1, single buffered']
    #allocation6 [shape = 's32[1]{0}', space=sflag, size = 0x4, scoped, tag = 'scoped memory for tpu_custom_call.1']
    #allocation7 [shape = 'u8[8192]{0}', space=vmem, size = 0x2000, scoped, tag = 'output window, operand 0, single buffered']
    %8 = vsyncpa [#allocation3], 0
    %9 = vsyncpa [#allocation6], 0
    %10 = vsyncpa [#allocation4], 0
    // Predicated region
    $region2: #{tpu_custom_call.1} parent=1 // pred_check
      _
    $region3: #{tpu_custom_call.1} parent=1 // pred_check_branch
      %12 = sbr.rel (0) target = $region5
    $region4: #{tpu_custom_call.1} parent=1 // pred_region
      %s14 = ssub.s32 256, 256
      %15 = vsyncadd [#allocation3], %s14
      %s17 = sshll.u32 [#allocation2], 4
      %s18 = int_to_ptr.vmem [resolvable:$true] %s17
      %20 = dma.hbm_to_vmem [thread:$0]  %s0, 256, %s18, [#allocation3]
    $region5: #{tpu_custom_call.1} parent=1 // pred_fallthru
      _
    // Predicated region
    $region6: #{tpu_custom_call.1} parent=1 // pred_check
      _
    $region7: #{tpu_custom_call.1} parent=1 // pred_check_branch
      %22 = sbr.rel (0) target = $region9
    $region8: #{tpu_custom_call.1} parent=1 // pred_region
      %s24 = ssub.s32 4096, 4096
      %25 = vsyncadd [#allocation6], %s24
      %s26 = sshll.u32 [#allocation5], 4
      %s27 = int_to_ptr.vmem [resolvable:$true] %s26
      %32 = dma.hbm_to_vmem [thread:$0]  %s1, 4096, %s27, [#allocation6], 1024, 1024, 64
    $region9: #{tpu_custom_call.1} parent=1 // pred_fallthru
      _
    // Predicated region
    $region10: #{tpu_custom_call.1} parent=1 // pred_check
      _
    $region11: #{tpu_custom_call.1} parent=1 // pred_check_branch
      %34 = sbr.rel (0) target = $region13
    $region12: #{tpu_custom_call.1} parent=1 // pred_region
      _
    $region13: #{tpu_custom_call.1} parent=1 // pred_fallthru
      _
    // Predicated region
    $region14: #{tpu_custom_call.1} parent=1 // pred_check
      _
    $region15: #{tpu_custom_call.1} parent=1 // pred_check_branch
      %36 = sbr.rel (0) target = $region17
    $region16: #{tpu_custom_call.1} parent=1 // pred_region
      %37 = dma.done [#allocation3], 256
    $region17: #{tpu_custom_call.1} parent=1 // pred_fallthru
      _
    // Predicated region
    $region18: #{tpu_custom_call.1} parent=1 // pred_check
      _
    $region19: #{tpu_custom_call.1} parent=1 // pred_check_branch
      %39 = sbr.rel (0) target = $region21
    $region20: #{tpu_custom_call.1} parent=1 // pred_region
      %40 = dma.done [#allocation6], 4096
    $region21: #{tpu_custom_call.1} parent=1 // pred_fallthru
      _
    %v41 = vld [vmem:[#allocation5] sm:$0xff]
    %v42 = vld [vmem:[#allocation5 + $0x8] sm:$0xff]
    %v43 = vld [vmem:[#allocation5 + $0x10] sm:$0xff]
    %v44 = vld [vmem:[#allocation5 + $0x18] sm:$0xff]
    %v45 = vld [vmem:[#allocation5 + $0x20] sm:$0xff]
    %v46 = vld [vmem:[#allocation5 + $0x28] sm:$0xff]
    %v47 = vld [vmem:[#allocation5 + $0x30] sm:$0xff]
    %v48 = vld [vmem:[#allocation5 + $0x38] sm:$0xff]
    %v49 = vld [vmem:[#allocation5 + $0x40] sm:$0xff]
    %v50 = vld [vmem:[#allocation5 + $0x48] sm:$0xff]
    %v51 = vld [vmem:[#allocation5 + $0x50] sm:$0xff]
    %v52 = vld [vmem:[#allocation5 + $0x58] sm:$0xff]
    %v53 = vld [vmem:[#allocation5 + $0x60] sm:$0xff]
    %v54 = vld [vmem:[#allocation5 + $0x68] sm:$0xff]
    %v55 = vld [vmem:[#allocation5 + $0x70] sm:$0xff]
    %v56 = vld [vmem:[#allocation5 + $0x78] sm:$0xff]
    %v57 = vld [vmem:[#allocation5 + $0x80] sm:$0xff]
    %v58 = vld [vmem:[#allocation5 + $0x88] sm:$0xff]
    %v59 = vld [vmem:[#allocation5 + $0x90] sm:$0xff]
    %v60 = vld [vmem:[#allocation5 + $0x98] sm:$0xff]
    %v61 = vld [vmem:[#allocation5 + $0xa0] sm:$0xff]
    %v62 = vld [vmem:[#allocation5 + $0xa8] sm:$0xff]
    %v63 = vld [vmem:[#allocation5 + $0xb0] sm:$0xff]
    %v64 = vld [vmem:[#allocation5 + $0xb8] sm:$0xff]
    %v65 = vld [vmem:[#allocation5 + $0xc0] sm:$0xff]
    %v66 = vld [vmem:[#allocation5 + $0xc8] sm:$0xff]
    %v67 = vld [vmem:[#allocation5 + $0xd0] sm:$0xff]
    %v68 = vld [vmem:[#allocation5 + $0xd8] sm:$0xff]
    %v69 = vld [vmem:[#allocation5 + $0xe0] sm:$0xff]
    %v70 = vld [vmem:[#allocation5 + $0xe8] sm:$0xff]
    %v71 = vld [vmem:[#allocation5 + $0xf0] sm:$0xff]
    %v72 = vld [vmem:[#allocation5 + $0xf8] sm:$0xff]
    %v73 = vld [vmem:[#allocation2] sm:$0xff]
    %v74 = vld [vmem:[#allocation2 + $0x8] sm:$0xff]
    %v75 = vld [vmem:[%s2] sm:$0x3]
    %v76 = vmul.f32 %v75, 0.25
    %v79 = vcombine.high %v73, %v73
    %v81 = vunpack.c.l.s4 1983009808
    %v82 = vunpack.c.0.s8 %v81
    %v83 = vlaneseq
    %v84 = vshrl.u32 %v83, 7
    %v85 = vsub.s32 %v82, %v84
    %v86 = vrot.slane %v73, %v85
    %v88 = vunpack.c.l.s4 1983009808
    %v89 = vunpack.c.0.s8 %v88
    %v90 = vlaneseq
    %v91 = vshrl.u32 %v90, 7
    %v92 = vsub.s32 %v89, %v91
    %v93 = vrot.slane %v79, %v92
    %v94 = vcombine.high %v86, %v86
    %v95 = vcombine.high %v93, %v93
    %v96 = vcombine.high %v74, %v74
    %v98 = vunpack.c.l.s4 1983009808
    %v99 = vunpack.c.0.s8 %v98
    %v100 = vlaneseq
    %v101 = vshrl.u32 %v100, 7
    %v102 = vsub.s32 %v99, %v101
    %v103 = vrot.slane %v74, %v102
    %v105 = vunpack.c.l.s4 1983009808
    %v106 = vunpack.c.0.s8 %v105
    %v107 = vlaneseq
    %v108 = vshrl.u32 %v107, 7
    %v109 = vsub.s32 %v106, %v108
    %v110 = vrot.slane %v96, %v109
    %v111 = vcombine.high %v103, %v103
    %v112 = vcombine.high %v110, %v110
    %121 = vmatprep.subr.mxu0 %v42
    %122 = vmatpush1.xpose.msra.mxu0 %v41
    %123 = vmatprep.subr.mxu0 %v50
    %124 = vmatpush1.xpose.msra.mxu0 %v49
    %125 = vmatprep.subr.mxu0 %v58
    %126 = vmatpush1.xpose.msra.mxu0 %v57
    %127 = vmatprep.subr.mxu0 %v66
    %128 = vmatpush1.xpose.msra.mxu0 %v65
    %129 = vmatprep.subr.mxu0 0.0
    %130 = vmatpush1.xpose.msra.mxu0 0.0
    %131 = vmatprep.subr.mxu0 0.0
    %132 = vmatpush1.xpose.msra.mxu0 0.0
    %133 = vmatprep.subr.mxu0 0.0
    %134 = vmatpush1.xpose.msra.mxu0 0.0
    %135 = vmatprep.subr.mxu0 0.0
    %136 = vmatpush1.xpose.msra.mxu0 0.0
    %137 = vmatprep.subr.mxu0 0.0
    %138 = vmatpush1.xpose.msra.mxu0 0.0
    %139 = vmatprep.subr.mxu0 0.0
    %140 = vmatpush1.xpose.msra.mxu0 0.0
    %141 = vmatprep.subr.mxu0 0.0
    %142 = vmatpush1.xpose.msra.mxu0 0.0
    %143 = vmatprep.subr.mxu0 0.0
    %144 = vmatpush1.xpose.msra.mxu0 0.0
    %145 = vmatprep.subr.mxu0 0.0
    %146 = vmatpush1.xpose.msra.mxu0 0.0
    %147 = vmatprep.subr.mxu0 0.0
    %148 = vmatpush1.xpose.msra.mxu0 0.0
    %149 = vmatprep.subr.mxu0 0.0
    %150 = vmatpush1.xpose.msra.mxu0 0.0
    %151 = vmatprep.subr.mxu0 0.0
    %152 = vmatpush1.xpose.msra.mxu0 0.0
    %153 = vmatprep.subr.mxu0 0.0
    %154 = vmatpush1.xpose.msra.mxu0 0.0
    %155 = vmatprep.subr.mxu0 0.0
    %156 = vmatpush1.xpose.msra.mxu0 0.0
    %157 = vmatprep.subr.mxu0 0.0
    %158 = vmatpush1.xpose.msra.mxu0 0.0
    %159 = vmatprep.subr.mxu0 0.0
    %160 = vmatpush1.xpose.msra.mxu0 0.0
    %161 = vmatprep.subr.mxu0 0.0
    %162 = vmatpush1.xpose.msra.mxu0 0.0
    %163 = vmatprep.subr.mxu0 0.0
    %164 = vmatpush1.xpose.msra.mxu0 0.0
    %165 = vmatprep.subr.mxu0 0.0
    %166 = vmatpush1.xpose.msra.mxu0 0.0
    %167 = vmatprep.subr.mxu0 0.0
    %168 = vmatpush1.xpose.msra.mxu0 0.0
    %169 = vmatprep.subr.mxu0 0.0
    %170 = vmatpush1.xpose.msra.mxu0 0.0
    %171 = vmatprep.subr.mxu0 0.0
    %172 = vmatpush1.xpose.msra.mxu0 0.0
    %173 = vmatprep.subr.mxu0 0.0
    %174 = vmatpush1.xpose.msra.mxu0 0.0
    %175 = vmatprep.subr.mxu0 0.0
    %176 = vmatpush1.xpose.msra.mxu0 0.0
    %177 = vmatprep.subr.mxu0 0.0
    %178 = vmatpush1.xpose.msra.mxu0 0.0
    %179 = vmatprep.subr.mxu0 0.0
    %180 = vmatpush1.xpose.msra.mxu0 0.0
    %181 = vmatprep.subr.mxu0 0.0
    %182 = vmatpush1.xpose.msra.mxu0 0.0
    %183 = vmatprep.subr.mxu0 0.0
    %184 = vmatpush1.xpose.msra.mxu0 0.0
    %185 = vmatprep.mubr.f32.mxu0 %v94
    %186 = vmatmul.mubr.f32.gmra.mrb[0].mxu0 %v86
    %v187 = vpop.f32.mrb[0].mxu0
    %v188 = vadd.f32 %v76, %v187
    %v189 = vpop.f32.mrb[0].mxu0
    %190 = vdwg.mxu0
    %191 = vmatprep.subr.mxu0 %v44
    %192 = vmatpush1.xpose.msra.mxu0 %v43
    %193 = vmatprep.subr.mxu0 %v52
    %194 = vmatpush1.xpose.msra.mxu0 %v51
    %195 = vmatprep.subr.mxu0 %v60
    %196 = vmatpush1.xpose.msra.mxu0 %v59
    %197 = vmatprep.subr.mxu0 %v68
    %198 = vmatpush1.xpose.msra.mxu0 %v67
    %199 = vmatprep.subr.mxu0 0.0
    %200 = vmatpush1.xpose.msra.mxu0 0.0
    %201 = vmatprep.subr.mxu0 0.0
    %202 = vmatpush1.xpose.msra.mxu0 0.0
    %203 = vmatprep.subr.mxu0 0.0
    %204 = vmatpush1.xpose.msra.mxu0 0.0
    %205 = vmatprep.subr.mxu0 0.0
    %206 = vmatpush1.xpose.msra.mxu0 0.0
    %207 = vmatprep.subr.mxu0 0.0
    %208 = vmatpush1.xpose.msra.mxu0 0.0
    %209 = vmatprep.subr.mxu0 0.0
    %210 = vmatpush1.xpose.msra.mxu0 0.0
    %211 = vmatprep.subr.mxu0 0.0
    %212 = vmatpush1.xpose.msra.mxu0 0.0
    %213 = vmatprep.subr.mxu0 0.0
    %214 = vmatpush1.xpose.msra.mxu0 0.0
    %215 = vmatprep.subr.mxu0 0.0
    %216 = vmatpush1.xpose.msra.mxu0 0.0
    %217 = vmatprep.subr.mxu0 0.0
    %218 = vmatpush1.xpose.msra.mxu0 0.0
    %219 = vmatprep.subr.mxu0 0.0
    %220 = vmatpush1.xpose.msra.mxu0 0.0
    %221 = vmatprep.subr.mxu0 0.0
    %222 = vmatpush1.xpose.msra.mxu0 0.0
    %223 = vmatprep.subr.mxu0 0.0
    %224 = vmatpush1.xpose.msra.mxu0 0.0
    %225 = vmatprep.subr.mxu0 0.0
    %226 = vmatpush1.xpose.msra.mxu0 0.0
    %227 = vmatprep.subr.mxu0 0.0
    %228 = vmatpush1.xpose.msra.mxu0 0.0
    %229 = vmatprep.subr.mxu0 0.0
    %230 = vmatpush1.xpose.msra.mxu0 0.0
    %231 = vmatprep.subr.mxu0 0.0
    %232 = vmatpush1.xpose.msra.mxu0 0.0
    %233 = vmatprep.subr.mxu0 0.0
    %234 = vmatpush1.xpose.msra.mxu0 0.0
    %235 = vmatprep.subr.mxu0 0.0
    %236 = vmatpush1.xpose.msra.mxu0 0.0
    %237 = vmatprep.subr.mxu0 0.0
    %238 = vmatpush1.xpose.msra.mxu0 0.0
    %239 = vmatprep.subr.mxu0 0.0
    %240 = vmatpush1.xpose.msra.mxu0 0.0
    %241 = vmatprep.subr.mxu0 0.0
    %242 = vmatpush1.xpose.msra.mxu0 0.0
    %243 = vmatprep.subr.mxu0 0.0
    %244 = vmatpush1.xpose.msra.mxu0 0.0
    %245 = vmatprep.subr.mxu0 0.0
    %246 = vmatpush1.xpose.msra.mxu0 0.0
    %247 = vmatprep.subr.mxu0 0.0
    %248 = vmatpush1.xpose.msra.mxu0 0.0
    %249 = vmatprep.subr.mxu0 0.0
    %250 = vmatpush1.xpose.msra.mxu0 0.0
    %251 = vmatprep.subr.mxu0 0.0
    %252 = vmatpush1.xpose.msra.mxu0 0.0
    %253 = vmatprep.subr.mxu0 0.0
    %254 = vmatpush1.xpose.msra.mxu0 0.0
    %255 = vmatprep.mubr.f32.mxu0 %v95
    %256 = vmatmul.mubr.f32.gmra.mrb[0].mxu0 %v93
    %v257 = vpop.f32.mrb[0].mxu0
    %v258 = vadd.f32 %v188, %v257
    %v259 = vpop.f32.mrb[0].mxu0
    %260 = vdwg.mxu0
    %261 = vmatprep.subr.mxu0 %v46
    %262 = vmatpush1.xpose.msra.mxu0 %v45
    %263 = vmatprep.subr.mxu0 %v54
    %264 = vmatpush1.xpose.msra.mxu0 %v53
    %265 = vmatprep.subr.mxu0 %v62
    %266 = vmatpush1.xpose.msra.mxu0 %v61
    %267 = vmatprep.subr.mxu0 %v70
    %268 = vmatpush1.xpose.msra.mxu0 %v69
    %269 = vmatprep.subr.mxu0 0.0
    %270 = vmatpush1.xpose.msra.mxu0 0.0
    %271 = vmatprep.subr.mxu0 0.0
    %272 = vmatpush1.xpose.msra.mxu0 0.0
    %273 = vmatprep.subr.mxu0 0.0
    %274 = vmatpush1.xpose.msra.mxu0 0.0
    %275 = vmatprep.subr.mxu0 0.0
    %276 = vmatpush1.xpose.msra.mxu0 0.0
    %277 = vmatprep.subr.mxu0 0.0
    %278 = vmatpush1.xpose.msra.mxu0 0.0
    %279 = vmatprep.subr.mxu0 0.0
    %280 = vmatpush1.xpose.msra.mxu0 0.0
    %281 = vmatprep.subr.mxu0 0.0
    %282 = vmatpush1.xpose.msra.mxu0 0.0
    %283 = vmatprep.subr.mxu0 0.0
    %284 = vmatpush1.xpose.msra.mxu0 0.0
    %285 = vmatprep.subr.mxu0 0.0
    %286 = vmatpush1.xpose.msra.mxu0 0.0
    %287 = vmatprep.subr.mxu0 0.0
    %288 = vmatpush1.xpose.msra.mxu0 0.0
    %289 = vmatprep.subr.mxu0 0.0
    %290 = vmatpush1.xpose.msra.mxu0 0.0
    %291 = vmatprep.subr.mxu0 0.0
    %292 = vmatpush1.xpose.msra.mxu0 0.0
    %293 = vmatprep.subr.mxu0 0.0
    %294 = vmatpush1.xpose.msra.mxu0 0.0
    %295 = vmatprep.subr.mxu0 0.0
    %296 = vmatpush1.xpose.msra.mxu0 0.0
    %297 = vmatprep.subr.mxu0 0.0
    %298 = vmatpush1.xpose.msra.mxu0 0.0
    %299 = vmatprep.subr.mxu0 0.0
    %300 = vmatpush1.xpose.msra.mxu0 0.0
    %301 = vmatprep.subr.mxu0 0.0
    %302 = vmatpush1.xpose.msra.mxu0 0.0
    %303 = vmatprep.subr.mxu0 0.0
    %304 = vmatpush1.xpose.msra.mxu0 0.0
    %305 = vmatprep.subr.mxu0 0.0
    %306 = vmatpush1.xpose.msra.mxu0 0.0
    %307 = vmatprep.subr.mxu0 0.0
    %308 = vmatpush1.xpose.msra.mxu0 0.0
    %309 = vmatprep.subr.mxu0 0.0
    %310 = vmatpush1.xpose.msra.mxu0 0.0
    %311 = vmatprep.subr.mxu0 0.0
    %312 = vmatpush1.xpose.msra.mxu0 0.0
    %313 = vmatprep.subr.mxu0 0.0
    %314 = vmatpush1.xpose.msra.mxu0 0.0
    %315 = vmatprep.subr.mxu0 0.0
    %316 = vmatpush1.xpose.msra.mxu0 0.0
    %317 = vmatprep.subr.mxu0 0.0
    %318 = vmatpush1.xpose.msra.mxu0 0.0
    %319 = vmatprep.subr.mxu0 0.0
    %320 = vmatpush1.xpose.msra.mxu0 0.0
    %321 = vmatprep.subr.mxu0 0.0
    %322 = vmatpush1.xpose.msra.mxu0 0.0
    %323 = vmatprep.subr.mxu0 0.0
    %324 = vmatpush1.xpose.msra.mxu0 0.0
    %325 = vmatprep.mubr.f32.mxu0 %v111
    %326 = vmatmul.mubr.f32.gmra.mrb[0].mxu0 %v103
    %v327 = vpop.f32.mrb[0].mxu0
    %v328 = vadd.f32 %v258, %v327
    %v329 = vpop.f32.mrb[0].mxu0
    %330 = vdwg.mxu0
    %331 = vmatprep.subr.mxu0 %v48
    %332 = vmatpush1.xpose.msra.mxu0 %v47
    %333 = vmatprep.subr.mxu0 %v56
    %334 = vmatpush1.xpose.msra.mxu0 %v55
    %335 = vmatprep.subr.mxu0 %v64
    %336 = vmatpush1.xpose.msra.mxu0 %v63
    %337 = vmatprep.subr.mxu0 %v72
    %338 = vmatpush1.xpose.msra.mxu0 %v71
    %339 = vmatprep.subr.mxu0 0.0
    %340 = vmatpush1.xpose.msra.mxu0 0.0
    %341 = vmatprep.subr.mxu0 0.0
    %342 = vmatpush1.xpose.msra.mxu0 0.0
    %343 = vmatprep.subr.mxu0 0.0
    %344 = vmatpush1.xpose.msra.mxu0 0.0
    %345 = vmatprep.subr.mxu0 0.0
    %346 = vmatpush1.xpose.msra.mxu0 0.0
    %347 = vmatprep.subr.mxu0 0.0
    %348 = vmatpush1.xpose.msra.mxu0 0.0
    %349 = vmatprep.subr.mxu0 0.0
    %350 = vmatpush1.xpose.msra.mxu0 0.0
    %351 = vmatprep.subr.mxu0 0.0
    %352 = vmatpush1.xpose.msra.mxu0 0.0
    %353 = vmatprep.subr.mxu0 0.0
    %354 = vmatpush1.xpose.msra.mxu0 0.0
    %355 = vmatprep.subr.mxu0 0.0
    %356 = vmatpush1.xpose.msra.mxu0 0.0
    %357 = vmatprep.subr.mxu0 0.0
    %358 = vmatpush1.xpose.msra.mxu0 0.0
    %359 = vmatprep.subr.mxu0 0.0
    %360 = vmatpush1.xpose.msra.mxu0 0.0
    %361 = vmatprep.subr.mxu0 0.0
    %362 = vmatpush1.xpose.msra.mxu0 0.0
    %363 = vmatprep.subr.mxu0 0.0
    %364 = vmatpush1.xpose.msra.mxu0 0.0
    %365 = vmatprep.subr.mxu0 0.0
    %366 = vmatpush1.xpose.msra.mxu0 0.0
    %367 = vmatprep.subr.mxu0 0.0
    %368 = vmatpush1.xpose.msra.mxu0 0.0
    %369 = vmatprep.subr.mxu0 0.0
    %370 = vmatpush1.xpose.msra.mxu0 0.0
    %371 = vmatprep.subr.mxu0 0.0
    %372 = vmatpush1.xpose.msra.mxu0 0.0
    %373 = vmatprep.subr.mxu0 0.0
    %374 = vmatpush1.xpose.msra.mxu0 0.0
    %375 = vmatprep.subr.mxu0 0.0
    %376 = vmatpush1.xpose.msra.mxu0 0.0
    %377 = vmatprep.subr.mxu0 0.0
    %378 = vmatpush1.xpose.msra.mxu0 0.0
    %379 = vmatprep.subr.mxu0 0.0
    %380 = vmatpush1.xpose.msra.mxu0 0.0
    %381 = vmatprep.subr.mxu0 0.0
    %382 = vmatpush1.xpose.msra.mxu0 0.0
    %383 = vmatprep.subr.mxu0 0.0
    %384 = vmatpush1.xpose.msra.mxu0 0.0
    %385 = vmatprep.subr.mxu0 0.0
    %386 = vmatpush1.xpose.msra.mxu0 0.0
    %387 = vmatprep.subr.mxu0 0.0
    %388 = vmatpush1.xpose.msra.mxu0 0.0
    %389 = vmatprep.subr.mxu0 0.0
    %390 = vmatpush1.xpose.msra.mxu0 0.0
    %391 = vmatprep.subr.mxu0 0.0
    %392 = vmatpush1.xpose.msra.mxu0 0.0
    %393 = vmatprep.subr.mxu0 0.0
    %394 = vmatpush1.xpose.msra.mxu0 0.0
    %395 = vmatprep.mubr.f32.mxu0 %v112
    %396 = vmatmul.mubr.f32.gmra.mrb[0].mxu0 %v110
    %v397 = vpop.f32.mrb[0].mxu0
    %v398 = vadd.f32 %v328, %v397
    %v399 = vpop.f32.mrb[0].mxu0
    %400 = vdwg.mxu0
    %vm401 = vcmask 261120
    %v403 = vsel %vm401, %v398, 0
    %405 = vmatprep.subr.mxu0 %v42
    %406 = vmatpush1.msra.mxu0 %v41
    %407 = vmatprep.subr.mxu0 %v50
    %408 = vmatpush1.msra.mxu0 %v49
    %409 = vmatprep.subr.mxu0 %v58
    %410 = vmatpush1.msra.mxu0 %v57
    %411 = vmatprep.subr.mxu0 %v66
    %412 = vmatpush1.msra.mxu0 %v65
    %413 = vmatprep.subr.mxu0 0.0
    %414 = vmatpush1.msra.mxu0 0.0
    %415 = vmatprep.subr.mxu0 0.0
    %416 = vmatpush1.msra.mxu0 0.0
    %417 = vmatprep.subr.mxu0 0.0
    %418 = vmatpush1.msra.mxu0 0.0
    %419 = vmatprep.subr.mxu0 0.0
    %420 = vmatpush1.msra.mxu0 0.0
    %421 = vmatprep.subr.mxu0 0.0
    %422 = vmatpush1.msra.mxu0 0.0
    %423 = vmatprep.subr.mxu0 0.0
    %424 = vmatpush1.msra.mxu0 0.0
    %425 = vmatprep.subr.mxu0 0.0
    %426 = vmatpush1.msra.mxu0 0.0
    %427 = vmatprep.subr.mxu0 0.0
    %428 = vmatpush1.msra.mxu0 0.0
    %429 = vmatprep.subr.mxu0 0.0
    %430 = vmatpush1.msra.mxu0 0.0
    %431 = vmatprep.subr.mxu0 0.0
    %432 = vmatpush1.msra.mxu0 0.0
    %433 = vmatprep.subr.mxu0 0.0
    %434 = vmatpush1.msra.mxu0 0.0
    %435 = vmatprep.subr.mxu0 0.0
    %436 = vmatpush1.msra.mxu0 0.0
    %437 = vmatprep.subr.mxu0 0.0
    %438 = vmatpush1.msra.mxu0 0.0
    %439 = vmatprep.subr.mxu0 0.0
    %440 = vmatpush1.msra.mxu0 0.0
    %441 = vmatprep.subr.mxu0 0.0
    %442 = vmatpush1.msra.mxu0 0.0
    %443 = vmatprep.subr.mxu0 0.0
    %444 = vmatpush1.msra.mxu0 0.0
    %445 = vmatprep.subr.mxu0 0.0
    %446 = vmatpush1.msra.mxu0 0.0
    %447 = vmatprep.subr.mxu0 0.0
    %448 = vmatpush1.msra.mxu0 0.0
    %449 = vmatprep.subr.mxu0 0.0
    %450 = vmatpush1.msra.mxu0 0.0
    %451 = vmatprep.subr.mxu0 0.0
    %452 = vmatpush1.msra.mxu0 0.0
    %453 = vmatprep.subr.mxu0 0.0
    %454 = vmatpush1.msra.mxu0 0.0
    %455 = vmatprep.subr.mxu0 0.0
    %456 = vmatpush1.msra.mxu0 0.0
    %457 = vmatprep.subr.mxu0 0.0
    %458 = vmatpush1.msra.mxu0 0.0
    %459 = vmatprep.subr.mxu0 0.0
    %460 = vmatpush1.msra.mxu0 0.0
    %461 = vmatprep.subr.mxu0 0.0
    %462 = vmatpush1.msra.mxu0 0.0
    %463 = vmatprep.subr.mxu0 0.0
    %464 = vmatpush1.msra.mxu0 0.0
    %465 = vmatprep.subr.mxu0 0.0
    %466 = vmatpush1.msra.mxu0 0.0
    %467 = vmatprep.subr.mxu0 0.0
    %468 = vmatpush1.msra.mxu0 0.0
    %469 = vmatprep.mubr.f32.mxu0 0.0
    %470 = vmatmul.mubr.f32.gmra.mrb[0].mxu0 %v403
    %v471 = vpop.f32.mrb[0].mxu0
    %v472 = vadd.f32 0.0, %v471
    %v473 = vpop.f32.mrb[0].mxu0
    %v474 = vadd.f32 0.0, %v473
    %475 = vdwg.mxu0
    %476 = vmatprep.subr.mxu0 %v44
    %477 = vmatpush1.msra.mxu0 %v43
    %478 = vmatprep.subr.mxu0 %v52
    %479 = vmatpush1.msra.mxu0 %v51
    %480 = vmatprep.subr.mxu0 %v60
    %481 = vmatpush1.msra.mxu0 %v59
    %482 = vmatprep.subr.mxu0 %v68
    %483 = vmatpush1.msra.mxu0 %v67
    %484 = vmatprep.subr.mxu0 0.0
    %485 = vmatpush1.msra.mxu0 0.0
    %486 = vmatprep.subr.mxu0 0.0
    %487 = vmatpush1.msra.mxu0 0.0
    %488 = vmatprep.subr.mxu0 0.0
    %489 = vmatpush1.msra.mxu0 0.0
    %490 = vmatprep.subr.mxu0 0.0
    %491 = vmatpush1.msra.mxu0 0.0
    %492 = vmatprep.subr.mxu0 0.0
    %493 = vmatpush1.msra.mxu0 0.0
    %494 = vmatprep.subr.mxu0 0.0
    %495 = vmatpush1.msra.mxu0 0.0
    %496 = vmatprep.subr.mxu0 0.0
    %497 = vmatpush1.msra.mxu0 0.0
    %498 = vmatprep.subr.mxu0 0.0
    %499 = vmatpush1.msra.mxu0 0.0
    %500 = vmatprep.subr.mxu0 0.0
    %501 = vmatpush1.msra.mxu0 0.0
    %502 = vmatprep.subr.mxu0 0.0
    %503 = vmatpush1.msra.mxu0 0.0
    %504 = vmatprep.subr.mxu0 0.0
    %505 = vmatpush1.msra.mxu0 0.0
    %506 = vmatprep.subr.mxu0 0.0
    %507 = vmatpush1.msra.mxu0 0.0
    %508 = vmatprep.subr.mxu0 0.0
    %509 = vmatpush1.msra.mxu0 0.0
    %510 = vmatprep.subr.mxu0 0.0
    %511 = vmatpush1.msra.mxu0 0.0
    %512 = vmatprep.subr.mxu0 0.0
    %513 = vmatpush1.msra.mxu0 0.0
    %514 = vmatprep.subr.mxu0 0.0
    %515 = vmatpush1.msra.mxu0 0.0
    %516 = vmatprep.subr.mxu0 0.0
    %517 = vmatpush1.msra.mxu0 0.0
    %518 = vmatprep.subr.mxu0 0.0
    %519 = vmatpush1.msra.mxu0 0.0
    %520 = vmatprep.subr.mxu0 0.0
    %521 = vmatpush1.msra.mxu0 0.0
    %522 = vmatprep.subr.mxu0 0.0
    %523 = vmatpush1.msra.mxu0 0.0
    %524 = vmatprep.subr.mxu0 0.0
    %525 = vmatpush1.msra.mxu0 0.0
    %526 = vmatprep.subr.mxu0 0.0
    %527 = vmatpush1.msra.mxu0 0.0
    %528 = vmatprep.subr.mxu0 0.0
    %529 = vmatpush1.msra.mxu0 0.0
    %530 = vmatprep.subr.mxu0 0.0
    %531 = vmatpush1.msra.mxu0 0.0
    %532 = vmatprep.subr.mxu0 0.0
    %533 = vmatpush1.msra.mxu0 0.0
    %534 = vmatprep.subr.mxu0 0.0
    %535 = vmatpush1.msra.mxu0 0.0
    %536 = vmatprep.subr.mxu0 0.0
    %537 = vmatpush1.msra.mxu0 0.0
    %538 = vmatprep.subr.mxu0 0.0
    %539 = vmatpush1.msra.mxu0 0.0
    %540 = vmatprep.mubr.f32.mxu0 0.0
    %541 = vmatmul.mubr.f32.gmra.mrb[0].mxu0 %v403
    %v542 = vpop.f32.mrb[0].mxu0
    %v543 = vadd.f32 0.0, %v542
    %v544 = vpop.f32.mrb[0].mxu0
    %v545 = vadd.f32 0.0, %v544
    %546 = vdwg.mxu0
    %547 = vmatprep.subr.mxu0 %v46
    %548 = vmatpush1.msra.mxu0 %v45
    %549 = vmatprep.subr.mxu0 %v54
    %550 = vmatpush1.msra.mxu0 %v53
    %551 = vmatprep.subr.mxu0 %v62
    %552 = vmatpush1.msra.mxu0 %v61
    %553 = vmatprep.subr.mxu0 %v70
    %554 = vmatpush1.msra.mxu0 %v69
    %555 = vmatprep.subr.mxu0 0.0
    %556 = vmatpush1.msra.mxu0 0.0
    %557 = vmatprep.subr.mxu0 0.0
    %558 = vmatpush1.msra.mxu0 0.0
    %559 = vmatprep.subr.mxu0 0.0
    %560 = vmatpush1.msra.mxu0 0.0
    %561 = vmatprep.subr.mxu0 0.0
    %562 = vmatpush1.msra.mxu0 0.0
    %563 = vmatprep.subr.mxu0 0.0
    %564 = vmatpush1.msra.mxu0 0.0
    %565 = vmatprep.subr.mxu0 0.0
    %566 = vmatpush1.msra.mxu0 0.0
    %567 = vmatprep.subr.mxu0 0.0
    %568 = vmatpush1.msra.mxu0 0.0
    %569 = vmatprep.subr.mxu0 0.0
    %570 = vmatpush1.msra.mxu0 0.0
    %571 = vmatprep.subr.mxu0 0.0
    %572 = vmatpush1.msra.mxu0 0.0
    %573 = vmatprep.subr.mxu0 0.0
    %574 = vmatpush1.msra.mxu0 0.0
    %575 = vmatprep.subr.mxu0 0.0
    %576 = vmatpush1.msra.mxu0 0.0
    %577 = vmatprep.subr.mxu0 0.0
    %578 = vmatpush1.msra.mxu0 0.0
    %579 = vmatprep.subr.mxu0 0.0
    %580 = vmatpush1.msra.mxu0 0.0
    %581 = vmatprep.subr.mxu0 0.0
    %582 = vmatpush1.msra.mxu0 0.0
    %583 = vmatprep.subr.mxu0 0.0
    %584 = vmatpush1.msra.mxu0 0.0
    %585 = vmatprep.subr.mxu0 0.0
    %586 = vmatpush1.msra.mxu0 0.0
    %587 = vmatprep.subr.mxu0 0.0
    %588 = vmatpush1.msra.mxu0 0.0
    %589 = vmatprep.subr.mxu0 0.0
    %590 = vmatpush1.msra.mxu0 0.0
    %591 = vmatprep.subr.mxu0 0.0
    %592 = vmatpush1.msra.mxu0 0.0
    %593 = vmatprep.subr.mxu0 0.0
    %594 = vmatpush1.msra.mxu0 0.0
    %595 = vmatprep.subr.mxu0 0.0
    %596 = vmatpush1.msra.mxu0 0.0
    %597 = vmatprep.subr.mxu0 0.0
    %598 = vmatpush1.msra.mxu0 0.0
    %599 = vmatprep.subr.mxu0 0.0
    %600 = vmatpush1.msra.mxu0 0.0
    %601 = vmatprep.subr.mxu0 0.0
    %602 = vmatpush1.msra.mxu0 0.0
    %603 = vmatprep.subr.mxu0 0.0
    %604 = vmatpush1.msra.mxu0 0.0
    %605 = vmatprep.subr.mxu0 0.0
    %606 = vmatpush1.msra.mxu0 0.0
    %607 = vmatprep.subr.mxu0 0.0
    %608 = vmatpush1.msra.mxu0 0.0
    %609 = vmatprep.subr.mxu0 0.0
    %610 = vmatpush1.msra.mxu0 0.0
    %611 = vmatprep.mubr.f32.mxu0 0.0
    %612 = vmatmul.mubr.f32.gmra.mrb[0].mxu0 %v403
    %v613 = vpop.f32.mrb[0].mxu0
    %v614 = vadd.f32 0.0, %v613
    %v615 = vpop.f32.mrb[0].mxu0
    %v616 = vadd.f32 0.0, %v615
    %617 = vdwg.mxu0
    %618 = vmatprep.subr.mxu0 %v48
    %619 = vmatpush1.msra.mxu0 %v47
    %620 = vmatprep.subr.mxu0 %v56
    %621 = vmatpush1.msra.mxu0 %v55
    %622 = vmatprep.subr.mxu0 %v64
    %623 = vmatpush1.msra.mxu0 %v63
    %624 = vmatprep.subr.mxu0 %v72
    %625 = vmatpush1.msra.mxu0 %v71
    %626 = vmatprep.subr.mxu0 0.0
    %627 = vmatpush1.msra.mxu0 0.0
    %628 = vmatprep.subr.mxu0 0.0
    %629 = vmatpush1.msra.mxu0 0.0
    %630 = vmatprep.subr.mxu0 0.0
    %631 = vmatpush1.msra.mxu0 0.0
    %632 = vmatprep.subr.mxu0 0.0
    %633 = vmatpush1.msra.mxu0 0.0
    %634 = vmatprep.subr.mxu0 0.0
    %635 = vmatpush1.msra.mxu0 0.0
    %636 = vmatprep.subr.mxu0 0.0
    %637 = vmatpush1.msra.mxu0 0.0
    %638 = vmatprep.subr.mxu0 0.0
    %639 = vmatpush1.msra.mxu0 0.0
    %640 = vmatprep.subr.mxu0 0.0
    %641 = vmatpush1.msra.mxu0 0.0
    %642 = vmatprep.subr.mxu0 0.0
    %643 = vmatpush1.msra.mxu0 0.0
    %644 = vmatprep.subr.mxu0 0.0
    %645 = vmatpush1.msra.mxu0 0.0
    %646 = vmatprep.subr.mxu0 0.0
    %647 = vmatpush1.msra.mxu0 0.0
    %648 = vmatprep.subr.mxu0 0.0
    %649 = vmatpush1.msra.mxu0 0.0
    %650 = vmatprep.subr.mxu0 0.0
    %651 = vmatpush1.msra.mxu0 0.0
    %652 = vmatprep.subr.mxu0 0.0
    %653 = vmatpush1.msra.mxu0 0.0
    %654 = vmatprep.subr.mxu0 0.0
    %655 = vmatpush1.msra.mxu0 0.0
    %656 = vmatprep.subr.mxu0 0.0
    %657 = vmatpush1.msra.mxu0 0.0
    %658 = vmatprep.subr.mxu0 0.0
    %659 = vmatpush1.msra.mxu0 0.0
    %660 = vmatprep.subr.mxu0 0.0
    %661 = vmatpush1.msra.mxu0 0.0
    %662 = vmatprep.subr.mxu0 0.0
    %663 = vmatpush1.msra.mxu0 0.0
    %664 = vmatprep.subr.mxu0 0.0
    %665 = vmatpush1.msra.mxu0 0.0
    %666 = vmatprep.subr.mxu0 0.0
    %667 = vmatpush1.msra.mxu0 0.0
    %668 = vmatprep.subr.mxu0 0.0
    %669 = vmatpush1.msra.mxu0 0.0
    %670 = vmatprep.subr.mxu0 0.0
    %671 = vmatpush1.msra.mxu0 0.0
    %672 = vmatprep.subr.mxu0 0.0
    %673 = vmatpush1.msra.mxu0 0.0
    %674 = vmatprep.subr.mxu0 0.0
    %675 = vmatpush1.msra.mxu0 0.0
    %676 = vmatprep.subr.mxu0 0.0
    %677 = vmatpush1.msra.mxu0 0.0
    %678 = vmatprep.subr.mxu0 0.0
    %679 = vmatpush1.msra.mxu0 0.0
    %680 = vmatprep.subr.mxu0 0.0
    %681 = vmatpush1.msra.mxu0 0.0
    %682 = vmatprep.mubr.f32.mxu0 0.0
    %683 = vmatmul.mubr.f32.gmra.mrb[0].mxu0 %v403
    %v684 = vpop.f32.mrb[0].mxu0
    %v685 = vadd.f32 0.0, %v684
    %v686 = vpop.f32.mrb[0].mxu0
    %v687 = vadd.f32 0.0, %v686
    %688 = vdwg.mxu0
    %v697 = vcombine.low %v472, %v474
    %v698 = vcombine.low %v543, %v545
    %v700 = vunpack.c.l.s4 1983009808
    %v701 = vunpack.c.0.s8 %v700
    %v702 = vlaneseq
    %v703 = vshrl.u32 %v702, 7
    %v704 = vsub.s32 %v701, %v703
    %v705 = vrot.slane %v697, %v704
    %v707 = vunpack.c.l.s4 1983009808
    %v708 = vunpack.c.0.s8 %v707
    %v709 = vlaneseq
    %v710 = vshrl.u32 %v709, 7
    %v711 = vsub.s32 %v708, %v710
    %v712 = vrot.slane %v698, %v711
    %v713 = vcombine.low %v705, %v712
    %v714 = vcombine.low %v614, %v616
    %v715 = vcombine.low %v685, %v687
    %v717 = vunpack.c.l.s4 1983009808
    %v718 = vunpack.c.0.s8 %v717
    %v719 = vlaneseq
    %v720 = vshrl.u32 %v719, 7
    %v721 = vsub.s32 %v718, %v720
    %v722 = vrot.slane %v714, %v721
    %v724 = vunpack.c.l.s4 1983009808
    %v725 = vunpack.c.0.s8 %v724
    %v726 = vlaneseq
    %v727 = vshrl.u32 %v726, 7
    %v728 = vsub.s32 %v725, %v727
    %v729 = vrot.slane %v715, %v728
    %v730 = vcombine.low %v722, %v729
    %733 = vst [vmem:[#allocation7] sm:$0xff] %v713
    %734 = vst [vmem:[#allocation7 + $0x8] sm:$0xff] %v730
    // Predicated region
    $region22: #{tpu_custom_call.1} parent=1 // pred_check
      _
    $region23: #{tpu_custom_call.1} parent=1 // pred_check_branch
      %736 = sbr.rel (0) target = $region25
    $region24: #{tpu_custom_call.1} parent=1 // pred_region
      %s738 = ssub.s32 256, 256
      %739 = vsyncadd [#allocation4], %s738
      %s741 = sshll.u32 [#allocation7], 4
      %s742 = int_to_ptr.vmem [resolvable:$true] %s741
      %744 = dma.vmem_to_hbm [thread:$0]  %s742, 256, %s3, [#allocation4]
    $region25: #{tpu_custom_call.1} parent=1 // pred_fallthru
      _
    // Predicated region
    $region26: #{tpu_custom_call.1} parent=1 // pred_check
      _
    $region27: #{tpu_custom_call.1} parent=1 // pred_check_branch
      %746 = sbr.rel (0) target = $region29
    $region28: #{tpu_custom_call.1} parent=1 // pred_region
      %747 = dma.done [#allocation4], 256
    $region29: #{tpu_custom_call.1} parent=1 // pred_fallthru
      _
    %748 = vsyncpa [#allocation3], 1
    %749 = vsyncpa [#allocation6], 1
    %750 = vsyncpa [#allocation4], 1

</llo_original>
